<compile_context>
chip_gen: v5e
topology: v5e:2x2
jax: 0.10.0
libtpu: 0.0.40
codegen_flags: <defaults>
</compile_context>

<pallas_src>
import jax
import jax.numpy as jnp
from jax.experimental import pallas as pl
from jax.experimental.pallas import tpu as pltpu


def _round_up(x, m):
    return ((x + m - 1) // m) * m


# ---------------------------------------------------------------------------
# Kernel: tiled matmul + bias with an F-reduction grid axis.
#   x:   (block_n, block_f)  f32
#   w:   (block_f, K_pad)    f32   (normalization pre-folded)
#   b:   (1, K_pad)          f32   (normalization pre-folded)
#   o:   (block_n, K_pad)    f32
#   acc: (block_n, K_pad)    f32 VMEM scratch (persists across the F axis)
# ---------------------------------------------------------------------------
def _linear_kernel(x_ref, w_ref, b_ref, o_ref, acc_ref):
    kk = pl.program_id(1)

    @pl.when(kk == 0)
    def _():
        acc_ref[...] = jnp.zeros_like(acc_ref)

    acc_ref[...] += jnp.dot(
        x_ref[...], w_ref[...], preferred_element_type=jnp.float32
    )

    @pl.when(kk == pl.num_programs(1) - 1)
    def _():
        o_ref[...] = acc_ref[...] + b_ref[...]


# ---------------------------------------------------------------------------
# One-time parameter preparation (construction time, NOT per call):
#  - fold (x - mu) / sigma into W and b (exact while `net` starts linear),
#  - zero-pad classes to a lane-dense multiple of 128,
#  - pick the F tile and zero-pad F so padded weight rows are exact zeros.
# ---------------------------------------------------------------------------
def prepare_params(mu, sigma, w, b, c, h, wdim, block_f_max=2048):
    hw = h * wdim
    f = c * hw
    k = w.shape[1]

    mu_row = jnp.repeat(mu.astype(jnp.float32), hw)                 # (F,) channel-major
    inv_sigma_row = jnp.repeat(1.0 / sigma.astype(jnp.float32), hw)  # (F,)

    w32 = w.astype(jnp.float32)
    b32 = b.reshape(1, k).astype(jnp.float32)
    w_folded = inv_sigma_row[:, None] * w32                          # row-scale
    b_folded = b32 - (mu_row * inv_sigma_row)[None, :] @ w32         # bias shift

    k_pad = _round_up(k, 128)
    if f <= block_f_max:
        block_f, f_pad = f, f            # single F step, whole-F block
    else:
        block_f = block_f_max
        f_pad = _round_up(f, block_f)    # tiled reduction over F

    w_pad = jnp.zeros((f_pad, k_pad), jnp.float32).at[:f, :k].set(w_folded)
    b_pad = jnp.zeros((1, k_pad), jnp.float32).at[:, :k].set(b_folded)
    return w_pad, b_pad, k, block_f


# ---------------------------------------------------------------------------
# OverfittingNet forward: single pallas_call (matmul + bias, norm pre-folded).
# ---------------------------------------------------------------------------
def overfitting_net_forward(x_nchw, w_pad, b_pad, num_classes, block_f):
    n, c, h, wdim = x_nchw.shape
    f = c * h * wdim
    f_pad, k_pad = w_pad.shape

    x_flat = x_nchw.reshape(n, f)        # lane-dense: F on the 128-lane axis
    if f_pad != f:
        # Padded weight rows are exact zeros, so pad x with zeros too (keeps the
        # F reduction exact; only needed when F is tiled).
        x_flat = jnp.pad(x_flat, ((0, 0), (0, f_pad - f)))

    # Batch tile: whole batch when tiny; otherwise a large 8-aligned tile capped
    # at 512 rows and at half the batch so the grid keeps >=2 steps (lets the
    # "parallel" axis shard across v7x's two TensorCores).
    if n <= 8:
        block_n = n
    else:
        block_n = min(512, _round_up(pl.cdiv(n, 2), 8))

    grid = (pl.cdiv(n, block_n), f_pad // block_f)

    out_padded = pl.pallas_call(
        _linear_kernel,
        out_shape=jax.ShapeDtypeStruct((n, k_pad), jnp.float32),
        grid_spec=pltpu.PrefetchScalarGridSpec(
            num_scalar_prefetch=0,
            grid=grid,
            in_specs=[
                pl.BlockSpec((block_n, block_f), lambda i, kk: (i, kk)),  # x tile
                pl.BlockSpec((block_f, k_pad), lambda i, kk: (kk, 0)),    # folded W
                pl.BlockSpec((1, k_pad), lambda i, kk: (0, 0)),           # folded bias
            ],
            out_specs=pl.BlockSpec((block_n, k_pad), lambda i, kk: (i, 0)),
            scratch_shapes=[pltpu.VMEM((block_n, k_pad), jnp.float32)],
        ),
        compiler_params=pltpu.CompilerParams(
            dimension_semantics=("parallel", "arbitrary"),
        ),
    )(x_flat, w_pad, b_pad)

    # Consumers that accept K_pad-wide logits (argmax/softmax over first K) can
    # skip this slice and avoid one extra HBM round trip.
    return out_padded[:, :num_classes]


if __name__ == "__main__":
    # Small deterministic shapes consistent with the module (C must be 3:
    # mu/sigma are viewed as (3,1,1) in the PyTorch spec).
    N, C, H, W = 2, 3, 16, 16
    NUM_CLASSES = 10

    key = jax.random.PRNGKey(0)
    kx, kw, kb = jax.random.split(key, 3)

    x = jax.random.uniform(kx, (N, C, H, W), dtype=jnp.float32)

    # Deterministic normalization stats (ImageNet-style).
    mu = jnp.array([0.485, 0.456, 0.406], dtype=jnp.float32)
    sigma = jnp.array([0.229, 0.224, 0.225], dtype=jnp.float32)

    # Deterministic stand-in `net` parameters.
    feat = C * H * W
    w = jax.random.normal(kw, (feat, NUM_CLASSES), dtype=jnp.float32) * 0.02
    b = jax.random.normal(kb, (1, NUM_CLASSES), dtype=jnp.float32) * 0.01

    # One-time prep: fold norm into W/b, lane-dense K pad, pick F tile.
    w_pad, b_pad, k, block_f = prepare_params(mu, sigma, w, b, C, H, W)

    out = overfitting_net_forward(x, w_pad, b_pad, NUM_CLASSES, block_f)
    jax.block_until_ready(out)

    # Cross-check against a plain-JAX reference of the original module semantics.
    ref = (
        ((x - mu.reshape(1, C, 1, 1)) / sigma.reshape(1, C, 1, 1)).reshape(N, -1)
        @ w
        + b
    )
    assert out.shape == (N, NUM_CLASSES)
    assert jnp.allclose(out, ref, atol=1e-4, rtol=1e-4)

    print("KERNEL_OK")
</pallas_src>

<mosaic_0001>
module attributes {stable_mosaic.version = 11 : i64} {
  func.func @_linear_kernel(%arg0: i32, %arg1: i32, %arg2: memref<2x768xf32, #tpu.memory_space<vmem>>, %arg3: memref<768x128xf32, #tpu.memory_space<vmem>>, %arg4: memref<1x128xf32, #tpu.memory_space<vmem>>, %arg5: memref<2x128xf32, #tpu.memory_space<vmem>>, %arg6: memref<2x128xf32, #tpu.memory_space<vmem>>) attributes {dimension_semantics = [#tpu.dimension_semantics<parallel>, #tpu.dimension_semantics<arbitrary>], iteration_bounds = array<i64: 1, 1>, scalar_prefetch = 0 : i64, scratch_operands = 1 : i64, tpu.core_type = #tpu.core_type<tc>, window_params = [{transform_indices = @transform_0, window_bounds = array<i64: 2, 768>}, {transform_indices = @transform_1, window_bounds = array<i64: 768, 128>}, {pipeline_mode = #tpu.pipeline_mode<synchronous>, transform_indices = @transform_2, window_bounds = array<i64: 1, 128>}, {transform_indices = @transform_3, window_bounds = array<i64: 2, 128>}]} {
    %c0_i32 = arith.constant 0 : i32
    %0 = arith.cmpi eq, %arg1, %c0_i32 : i32
    %1 = arith.extui %0 : i1 to i32
    %c0_i32_0 = arith.constant 0 : i32
    %2 = arith.cmpi ne, %1, %c0_i32_0 : i32
    scf.if %2 {
      %cst_10 = arith.constant 0.000000e+00 : f32
      %12 = vector.broadcast %cst_10 : f32 to vector<2x128xf32>
      %c0_11 = arith.constant 0 : index
      %c0_12 = arith.constant 0 : index
      %13 = vector.load %arg6[%c0_11, %c0_12] : memref<2x128xf32, #tpu.memory_space<vmem>>, vector<2x128xf32>
      tpu.vector_store %arg6[%c0_11, %c0_12], %12 {strides = array<i32>} : memref<2x128xf32, #tpu.memory_space<vmem>>, vector<2x128xf32>,
    } else {
    }
    %c0 = arith.constant 0 : index
    %c0_1 = arith.constant 0 : index
    %3 = vector.load %arg6[%c0, %c0_1] : memref<2x128xf32, #tpu.memory_space<vmem>>, vector<2x128xf32>
    %c0_2 = arith.constant 0 : index
    %c0_3 = arith.constant 0 : index
    %4 = vector.load %arg2[%c0_2, %c0_3] : memref<2x768xf32, #tpu.memory_space<vmem>>, vector<2x768xf32>
    %c0_4 = arith.constant 0 : index
    %c0_5 = arith.constant 0 : index
    %5 = vector.load %arg3[%c0_4, %c0_5] : memref<768x128xf32, #tpu.memory_space<vmem>>, vector<768x128xf32>
    %cst = arith.constant dense<0.000000e+00> : vector<2x128xf32>
    %6 = tpu.matmul %4, %5, %cst {dimension_numbers = #tpu.dot_dimension_numbers<[1], [0], [0], [1], [0, 0, 1, 1], [], []>} : vector<2x768xf32>, vector<768x128xf32>, vector<2x128xf32> -> vector<2x128xf32>
    %7 = arith.addf %3, %6 : vector<2x128xf32>
    %c0_6 = arith.constant 0 : index
    %c0_7 = arith.constant 0 : index
    %8 = vector.load %arg6[%c0_6, %c0_7] : memref<2x128xf32, #tpu.memory_space<vmem>>, vector<2x128xf32>
    tpu.vector_store %arg6[%c0_6, %c0_7], %7 {strides = array<i32>} : memref<2x128xf32, #tpu.memory_space<vmem>>, vector<2x128xf32>,
    %c0_i32_8 = arith.constant 0 : i32
    %9 = arith.cmpi eq, %arg1, %c0_i32_8 : i32
    %10 = arith.extui %9 : i1 to i32
    %c0_i32_9 = arith.constant 0 : i32
    %11 = arith.cmpi ne, %10, %c0_i32_9 : i32
    scf.if %11 {
      %c0_10 = arith.constant 0 : index
      %c0_11 = arith.constant 0 : index
      %12 = vector.load %arg6[%c0_10, %c0_11] : memref<2x128xf32, #tpu.memory_space<vmem>>, vector<2x128xf32>
      %c0_12 = arith.constant 0 : index
      %c0_13 = arith.constant 0 : index
      %13 = vector.load %arg4[%c0_12, %c0_13] : memref<1x128xf32, #tpu.memory_space<vmem>>, vector<1x128xf32>
      %14 = vector.broadcast %13 : vector<1x128xf32> to vector<2x128xf32>
      %15 = arith.addf %12, %14 : vector<2x128xf32>
      %c0_14 = arith.constant 0 : index
      %c0_15 = arith.constant 0 : index
      %16 = vector.load %arg5[%c0_14, %c0_15] : memref<2x128xf32, #tpu.memory_space<vmem>>, vector<2x128xf32>
      tpu.vector_store %arg5[%c0_14, %c0_15], %15 {strides = array<i32>} : memref<2x128xf32, #tpu.memory_space<vmem>>, vector<2x128xf32>,
    } else {
    }
    return
  }
  func.func @transform_0(%arg0: i32, %arg1: i32) -> (i32, i32) {
    %c0_i32 = arith.constant 0 : i32
    return %arg0, %arg1 : i32, i32
  }
  func.func @transform_1(%arg0: i32, %arg1: i32) -> (i32, i32) {
    %c0_i32 = arith.constant 0 : i32
    %c0_i32_0 = arith.constant 0 : i32
    return %arg1, %c0_i32 : i32, i32
  }
  func.func @transform_2(%arg0: i32, %arg1: i32) -> (i32, i32) {
    %c0_i32 = arith.constant 0 : i32
    %c0_i32_0 = arith.constant 0 : i32
    %c0_i32_1 = arith.constant 0 : i32
    return %c0_i32, %c0_i32_0 : i32, i32
  }
  func.func @transform_3(%arg0: i32, %arg1: i32) -> (i32, i32) {
    %c0_i32 = arith.constant 0 : i32
    %c0_i32_0 = arith.constant 0 : i32
    return %arg0, %c0_i32 : i32, i32
  }
}

</mosaic_0001>

<llo_original>
// kernel: tpu_custom_call.1
$region0: #{tpu_custom_call.1}
  #allocation0 [shape = 'u32[]', space=smem, size = 0x4, offset = 0x4, fixed_abs, tag = 'smem constant byte address 0x4 - core index']
  #allocation1 [shape = 'u32[72,128]{1,0:T(1,128)}', space=vmem, size = 0x9000, scoped, tag = 'internal scratch']
  #allocation2 [shape = 'f32[2,128]{1,0:T(2,128)}', space=vmem, size = 0x400, scoped, tag = 'scratch operand']
  %s0 = inlined_call_operand.hbm [shape: f32[2,768], index: 0, kind: input, shape index: {}]
  %s1 = inlined_call_operand.hbm [shape: f32[768,128], index: 1, kind: input, shape index: {}]
  %s2 = inlined_call_operand.vmem [shape: f32[1,128], index: 2, kind: input, shape index: {}]
  %s3 = inlined_call_operand.hbm [shape: f32[2,128], index: 3, kind: output, shape index: {}]
  %s4 = sld [smem:[#allocation0]]
  $region38: #{tpu_custom_call.1} parent=0
    _
  %s6 = ssub.s32 1, %s4
  %s7 = scalar_select 0, %s6, %s4
  $region1: #{tpu_custom_call.1} parent=0
    #allocation3 [shape = 'u8[6144]{0}', space=vmem, size = 0x1800, scoped, tag = 'input window, operand 0, single buffered']
    #allocation4 [shape = 's32[1]{0}', space=sflag, size = 0x4, scoped, tag = 'scoped memory for tpu_custom_call.1']
    #allocation5 [shape = 's32[1]{0}', space=sflag, size = 0x4, scoped, tag = 'scoped memory for tpu_custom_call.1']
    #allocation6 [shape = 'u8[393216]{0}', space=vmem, size = 0x60000, scoped, tag = 'input window, operand 1, single buffered']
    #allocation7 [shape = 's32[1]{0}', space=sflag, size = 0x4, scoped, tag = 'scoped memory for tpu_custom_call.1']
    #allocation8 [shape = 'u8[1024]{0}', space=vmem, size = 0x400, scoped, tag = 'output window, operand 0, single buffered']
    %8 = vsyncpa [#allocation4], 0
    %9 = vsyncpa [#allocation7], 0
    %10 = vsyncpa [#allocation5], 0
    // Predicated region
    $region2: #{tpu_custom_call.1} parent=1 // pred_check
      _
    $region3: #{tpu_custom_call.1} parent=1 // pred_check_branch
      %12 = sbr.rel (0) target = $region5
    $region4: #{tpu_custom_call.1} parent=1 // pred_region
      %14 = vsyncadd [#allocation4], 0
      %s16 = sshll.u32 %s0, 4
      %s17 = int_to_ptr.hbm [resolvable:$true] %s16
      %s18 = sshll.u32 [#allocation3], 4
      %s19 = int_to_ptr.vmem [resolvable:$true] %s18
      %21 = dma.hbm_to_vmem [thread:$0]  %s17, 192, %s19, [#allocation4]
    $region5: #{tpu_custom_call.1} parent=1 // pred_fallthru
      _
    // Predicated region
    $region6: #{tpu_custom_call.1} parent=1 // pred_check
      _
    $region7: #{tpu_custom_call.1} parent=1 // pred_check_branch
      %23 = sbr.rel (0) target = $region9
    $region8: #{tpu_custom_call.1} parent=1 // pred_region
      %25 = vsyncadd [#allocation7], 0
      %s26 = sshll.u32 %s1, 4
      %s27 = int_to_ptr.hbm [resolvable:$true] %s26
      %s28 = sshll.u32 [#allocation6], 4
      %s29 = int_to_ptr.vmem [resolvable:$true] %s28
      %34 = dma.hbm_to_vmem [thread:$0]  %s27, 12288, %s29, [#allocation7], 128, 128, 8
    $region9: #{tpu_custom_call.1} parent=1 // pred_fallthru
      _
    // Predicated region
    $region10: #{tpu_custom_call.1} parent=1 // pred_check
      _
    $region11: #{tpu_custom_call.1} parent=1 // pred_check_branch
      %36 = sbr.rel (0) target = $region13
    $region12: #{tpu_custom_call.1} parent=1 // pred_region
      _
    $region13: #{tpu_custom_call.1} parent=1 // pred_fallthru
      _
    // Predicated region
    $region14: #{tpu_custom_call.1} parent=1 // pred_check
      _
    $region15: #{tpu_custom_call.1} parent=1 // pred_check_branch
      %38 = sbr.rel (0) target = $region17
    $region16: #{tpu_custom_call.1} parent=1 // pred_region
      %40 = dma.done [#allocation4], 192
    $region17: #{tpu_custom_call.1} parent=1 // pred_fallthru
      _
    // Predicated region
    $region18: #{tpu_custom_call.1} parent=1 // pred_check
      _
    $region19: #{tpu_custom_call.1} parent=1 // pred_check_branch
      %42 = sbr.rel (0) target = $region21
    $region20: #{tpu_custom_call.1} parent=1 // pred_region
      %44 = dma.done [#allocation7], 12288
    $region21: #{tpu_custom_call.1} parent=1 // pred_fallthru
      _
    %p45 = scmp.eq.s32.totalorder 0, 0
    // Predicated region
    $region22: #{tpu_custom_call.1} parent=1 // pred_check
      %p46 = pneg %p45
    $region23: #{tpu_custom_call.1} parent=1 // pred_check_branch
      %48 = sbr.rel (%p46) target = $region25
    $region24: #{tpu_custom_call.1} parent=1 // pred_region
      %49 = vst [vmem:[#allocation2] sm:$0x3] 0.0
    $region25: #{tpu_custom_call.1} parent=1 // pred_fallthru
      _
    %v50 = vld [vmem:[#allocation2] sm:$0x3]
    %v51 = vld [vmem:[#allocation3] sm:$0xff]
    %v52 = vld [vmem:[#allocation3 + $0x8] sm:$0xf]
    %v53 = vld [vmem:[#allocation6] sm:$0xff]
    %v54 = vld [vmem:[#allocation6 + $0x8] sm:$0xff]
    %v55 = vld [vmem:[#allocation6 + $0x10] sm:$0xff]
    %v56 = vld [vmem:[#allocation6 + $0x18] sm:$0xff]
    %v57 = vld [vmem:[#allocation6 + $0x20] sm:$0xff]
    %v58 = vld [vmem:[#allocation6 + $0x28] sm:$0xff]
    %v59 = vld [vmem:[#allocation6 + $0x30] sm:$0xff]
    %v60 = vld [vmem:[#allocation6 + $0x38] sm:$0xff]
    %v61 = vld [vmem:[#allocation6 + $0x40] sm:$0xff]
    %v62 = vld [vmem:[#allocation6 + $0x48] sm:$0xff]
    %v63 = vld [vmem:[#allocation6 + $0x50] sm:$0xff]
    %v64 = vld [vmem:[#allocation6 + $0x58] sm:$0xff]
    %v65 = vld [vmem:[#allocation6 + $0x60] sm:$0xff]
    %v66 = vld [vmem:[#allocation6 + $0x68] sm:$0xff]
    %v67 = vld [vmem:[#allocation6 + $0x70] sm:$0xff]
    %v68 = vld [vmem:[#allocation6 + $0x78] sm:$0xff]
    %v69 = vld [vmem:[#allocation6 + $0x80] sm:$0xff]
    %v70 = vld [vmem:[#allocation6 + $0x88] sm:$0xff]
    %v71 = vld [vmem:[#allocation6 + $0x90] sm:$0xff]
    %v72 = vld [vmem:[#allocation6 + $0x98] sm:$0xff]
    %v73 = vld [vmem:[#allocation6 + $0xa0] sm:$0xff]
    %v74 = vld [vmem:[#allocation6 + $0xa8] sm:$0xff]
    %v75 = vld [vmem:[#allocation6 + $0xb0] sm:$0xff]
    %v76 = vld [vmem:[#allocation6 + $0xb8] sm:$0xff]
    %v77 = vld [vmem:[#allocation6 + $0xc0] sm:$0xff]
    %v78 = vld [vmem:[#allocation6 + $0xc8] sm:$0xff]
    %v79 = vld [vmem:[#allocation6 + $0xd0] sm:$0xff]
    %v80 = vld [vmem:[#allocation6 + $0xd8] sm:$0xff]
    %v81 = vld [vmem:[#allocation6 + $0xe0] sm:$0xff]
    %v82 = vld [vmem:[#allocation6 + $0xe8] sm:$0xff]
    %v83 = vld [vmem:[#allocation6 + $0xf0] sm:$0xff]
    %v84 = vld [vmem:[#allocation6 + $0xf8] sm:$0xff]
    %v85 = vld [vmem:[#allocation6 + $0x100] sm:$0xff]
    %v86 = vld [vmem:[#allocation6 + $0x108] sm:$0xff]
    %v87 = vld [vmem:[#allocation6 + $0x110] sm:$0xff]
    %v88 = vld [vmem:[#allocation6 + $0x118] sm:$0xff]
    %v89 = vld [vmem:[#allocation6 + $0x120] sm:$0xff]
    %v90 = vld [vmem:[#allocation6 + $0x128] sm:$0xff]
    %v91 = vld [vmem:[#allocation6 + $0x130] sm:$0xff]
    %v92 = vld [vmem:[#allocation6 + $0x138] sm:$0xff]
    %v93 = vld [vmem:[#allocation6 + $0x140] sm:$0xff]
    %v94 = vld [vmem:[#allocation6 + $0x148] sm:$0xff]
    %v95 = vld [vmem:[#allocation6 + $0x150] sm:$0xff]
    %v96 = vld [vmem:[#allocation6 + $0x158] sm:$0xff]
    %v97 = vld [vmem:[#allocation6 + $0x160] sm:$0xff]
    %v98 = vld [vmem:[#allocation6 + $0x168] sm:$0xff]
    %v99 = vld [vmem:[#allocation6 + $0x170] sm:$0xff]
    %v100 = vld [vmem:[#allocation6 + $0x178] sm:$0xff]
    %v101 = vld [vmem:[#allocation6 + $0x180] sm:$0xff]
    %v102 = vld [vmem:[#allocation6 + $0x188] sm:$0xff]
    %v103 = vld [vmem:[#allocation6 + $0x190] sm:$0xff]
    %v104 = vld [vmem:[#allocation6 + $0x198] sm:$0xff]
    %v105 = vld [vmem:[#allocation6 + $0x1a0] sm:$0xff]
    %v106 = vld [vmem:[#allocation6 + $0x1a8] sm:$0xff]
    %v107 = vld [vmem:[#allocation6 + $0x1b0] sm:$0xff]
    %v108 = vld [vmem:[#allocation6 + $0x1b8] sm:$0xff]
    %v109 = vld [vmem:[#allocation6 + $0x1c0] sm:$0xff]
    %v110 = vld [vmem:[#allocation6 + $0x1c8] sm:$0xff]
    %v111 = vld [vmem:[#allocation6 + $0x1d0] sm:$0xff]
    %v112 = vld [vmem:[#allocation6 + $0x1d8] sm:$0xff]
    %v113 = vld [vmem:[#allocation6 + $0x1e0] sm:$0xff]
    %v114 = vld [vmem:[#allocation6 + $0x1e8] sm:$0xff]
    %v115 = vld [vmem:[#allocation6 + $0x1f0] sm:$0xff]
    %v116 = vld [vmem:[#allocation6 + $0x1f8] sm:$0xff]
    %v117 = vld [vmem:[#allocation6 + $0x200] sm:$0xff]
    %v118 = vld [vmem:[#allocation6 + $0x208] sm:$0xff]
    %v119 = vld [vmem:[#allocation6 + $0x210] sm:$0xff]
    %v120 = vld [vmem:[#allocation6 + $0x218] sm:$0xff]
    %v121 = vld [vmem:[#allocation6 + $0x220] sm:$0xff]
    %v122 = vld [vmem:[#allocation6 + $0x228] sm:$0xff]
    %v123 = vld [vmem:[#allocation6 + $0x230] sm:$0xff]
    %v124 = vld [vmem:[#allocation6 + $0x238] sm:$0xff]
    %v125 = vld [vmem:[#allocation6 + $0x240] sm:$0xff]
    %v126 = vld [vmem:[#allocation6 + $0x248] sm:$0xff]
    %v127 = vld [vmem:[#allocation6 + $0x250] sm:$0xff]
    %v128 = vld [vmem:[#allocation6 + $0x258] sm:$0xff]
    %v129 = vld [vmem:[#allocation6 + $0x260] sm:$0xff]
    %v130 = vld [vmem:[#allocation6 + $0x268] sm:$0xff]
    %v131 = vld [vmem:[#allocation6 + $0x270] sm:$0xff]
    %v132 = vld [vmem:[#allocation6 + $0x278] sm:$0xff]
    %v133 = vld [vmem:[#allocation6 + $0x280] sm:$0xff]
    %v134 = vld [vmem:[#allocation6 + $0x288] sm:$0xff]
    %v135 = vld [vmem:[#allocation6 + $0x290] sm:$0xff]
    %v136 = vld [vmem:[#allocation6 + $0x298] sm:$0xff]
    %v137 = vld [vmem:[#allocation6 + $0x2a0] sm:$0xff]
    %v138 = vld [vmem:[#allocation6 + $0x2a8] sm:$0xff]
    %v139 = vld [vmem:[#allocation6 + $0x2b0] sm:$0xff]
    %v140 = vld [vmem:[#allocation6 + $0x2b8] sm:$0xff]
    %v141 = vld [vmem:[#allocation6 + $0x2c0] sm:$0xff]
    %v142 = vld [vmem:[#allocation6 + $0x2c8] sm:$0xff]
    %v143 = vld [vmem:[#allocation6 + $0x2d0] sm:$0xff]
    %v144 = vld [vmem:[#allocation6 + $0x2d8] sm:$0xff]
    %v145 = vld [vmem:[#allocation6 + $0x2e0] sm:$0xff]
    %v146 = vld [vmem:[#allocation6 + $0x2e8] sm:$0xff]
    %v147 = vld [vmem:[#allocation6 + $0x2f0] sm:$0xff]
    %v148 = vld [vmem:[#allocation6 + $0x2f8] sm:$0xff]
    %151 = vst [vmem:[#allocation1] ss:$4 sm:$0xff] %v51
    %s152 = scalar_lea.vmem [#allocation1], 32
    %153 = vst [vmem:[%s152] ss:$4 sm:$0xff] %v52
    %v154 = vld.sshfl [vmem:[#allocation1] sm:$0xff pattern:$0x73625140]
    %v155 = vld.sshfl [vmem:[#allocation1 + $0x8] sm:$0xff pattern:$0x73625140]
    %v156 = vld.sshfl [vmem:[#allocation1 + $0x10] sm:$0xff pattern:$0x73625140]
    %v157 = vld.sshfl [vmem:[#allocation1 + $0x18] sm:$0xff pattern:$0x73625140]
    %v158 = vld.sshfl [vmem:[#allocation1 + $0x20] sm:$0xff pattern:$0x73625140]
    %v159 = vld.sshfl [vmem:[#allocation1 + $0x28] sm:$0xff pattern:$0x73625140]
    %166 = vmatpush.msra.mxu0 %v68
    %167 = vmatpush.msra.mxu0 %v67
    %168 = vmatpush.msra.mxu0 %v66
    %169 = vmatpush.msra.mxu0 %v65
    %170 = vmatpush.msra.mxu0 %v64
    %171 = vmatpush.msra.mxu0 %v63
    %172 = vmatpush.msra.mxu0 %v62
    %173 = vmatpush.msra.mxu0 %v61
    %174 = vmatpush.msra.mxu0 %v60
    %175 = vmatpush.msra.mxu0 %v59
    %176 = vmatpush.msra.mxu0 %v58
    %177 = vmatpush.msra.mxu0 %v57
    %178 = vmatpush.msra.mxu0 %v56
    %179 = vmatpush.msra.mxu0 %v55
    %180 = vmatpush.msra.mxu0 %v54
    %181 = vmatpush.msra.mxu0 %v53
    %182 = vmatmul.f32.gmra.mxu0 %v154
    %v183 = vpop.f32.mrf.mxu0
    %v184 = vadd.f32 0.0, %v183
    %185 = vdwg.mxu0
    %186 = vmatpush.msra.mxu0 %v84
    %187 = vmatpush.msra.mxu0 %v83
    %188 = vmatpush.msra.mxu0 %v82
    %189 = vmatpush.msra.mxu0 %v81
    %190 = vmatpush.msra.mxu0 %v80
    %191 = vmatpush.msra.mxu0 %v79
    %192 = vmatpush.msra.mxu0 %v78
    %193 = vmatpush.msra.mxu0 %v77
    %194 = vmatpush.msra.mxu0 %v76
    %195 = vmatpush.msra.mxu0 %v75
    %196 = vmatpush.msra.mxu0 %v74
    %197 = vmatpush.msra.mxu0 %v73
    %198 = vmatpush.msra.mxu0 %v72
    %199 = vmatpush.msra.mxu0 %v71
    %200 = vmatpush.msra.mxu0 %v70
    %201 = vmatpush.msra.mxu0 %v69
    %202 = vmatmul.f32.gmra.mxu0 %v155
    %v203 = vpop.f32.mrf.mxu0
    %v204 = vadd.f32 %v184, %v203
    %205 = vdwg.mxu0
    %206 = vmatpush.msra.mxu0 %v100
    %207 = vmatpush.msra.mxu0 %v99
    %208 = vmatpush.msra.mxu0 %v98
    %209 = vmatpush.msra.mxu0 %v97
    %210 = vmatpush.msra.mxu0 %v96
    %211 = vmatpush.msra.mxu0 %v95
    %212 = vmatpush.msra.mxu0 %v94
    %213 = vmatpush.msra.mxu0 %v93
    %214 = vmatpush.msra.mxu0 %v92
    %215 = vmatpush.msra.mxu0 %v91
    %216 = vmatpush.msra.mxu0 %v90
    %217 = vmatpush.msra.mxu0 %v89
    %218 = vmatpush.msra.mxu0 %v88
    %219 = vmatpush.msra.mxu0 %v87
    %220 = vmatpush.msra.mxu0 %v86
    %221 = vmatpush.msra.mxu0 %v85
    %222 = vmatmul.f32.gmra.mxu0 %v156
    %v223 = vpop.f32.mrf.mxu0
    %v224 = vadd.f32 %v204, %v223
    %225 = vdwg.mxu0
    %226 = vmatpush.msra.mxu0 %v116
    %227 = vmatpush.msra.mxu0 %v115
    %228 = vmatpush.msra.mxu0 %v114
    %229 = vmatpush.msra.mxu0 %v113
    %230 = vmatpush.msra.mxu0 %v112
    %231 = vmatpush.msra.mxu0 %v111
    %232 = vmatpush.msra.mxu0 %v110
    %233 = vmatpush.msra.mxu0 %v109
    %234 = vmatpush.msra.mxu0 %v108
    %235 = vmatpush.msra.mxu0 %v107
    %236 = vmatpush.msra.mxu0 %v106
    %237 = vmatpush.msra.mxu0 %v105
    %238 = vmatpush.msra.mxu0 %v104
    %239 = vmatpush.msra.mxu0 %v103
    %240 = vmatpush.msra.mxu0 %v102
    %241 = vmatpush.msra.mxu0 %v101
    %242 = vmatmul.f32.gmra.mxu0 %v157
    %v243 = vpop.f32.mrf.mxu0
    %v244 = vadd.f32 %v224, %v243
    %245 = vdwg.mxu0
    %246 = vmatpush.msra.mxu0 %v132
    %247 = vmatpush.msra.mxu0 %v131
    %248 = vmatpush.msra.mxu0 %v130
    %249 = vmatpush.msra.mxu0 %v129
    %250 = vmatpush.msra.mxu0 %v128
    %251 = vmatpush.msra.mxu0 %v127
    %252 = vmatpush.msra.mxu0 %v126
    %253 = vmatpush.msra.mxu0 %v125
    %254 = vmatpush.msra.mxu0 %v124
    %255 = vmatpush.msra.mxu0 %v123
    %256 = vmatpush.msra.mxu0 %v122
    %257 = vmatpush.msra.mxu0 %v121
    %258 = vmatpush.msra.mxu0 %v120
    %259 = vmatpush.msra.mxu0 %v119
    %260 = vmatpush.msra.mxu0 %v118
    %261 = vmatpush.msra.mxu0 %v117
    %262 = vmatmul.f32.gmra.mxu0 %v158
    %v263 = vpop.f32.mrf.mxu0
    %v264 = vadd.f32 %v244, %v263
    %265 = vdwg.mxu0
    %266 = vmatpush.msra.mxu0 %v148
    %267 = vmatpush.msra.mxu0 %v147
    %268 = vmatpush.msra.mxu0 %v146
    %269 = vmatpush.msra.mxu0 %v145
    %270 = vmatpush.msra.mxu0 %v144
    %271 = vmatpush.msra.mxu0 %v143
    %272 = vmatpush.msra.mxu0 %v142
    %273 = vmatpush.msra.mxu0 %v141
    %274 = vmatpush.msra.mxu0 %v140
    %275 = vmatpush.msra.mxu0 %v139
    %276 = vmatpush.msra.mxu0 %v138
    %277 = vmatpush.msra.mxu0 %v137
    %278 = vmatpush.msra.mxu0 %v136
    %279 = vmatpush.msra.mxu0 %v135
    %280 = vmatpush.msra.mxu0 %v134
    %281 = vmatpush.msra.mxu0 %v133
    %282 = vmatmul.f32.gmra.mxu0 %v159
    %v283 = vpop.f32.mrf.mxu0
    %v284 = vadd.f32 %v264, %v283
    %285 = vdwg.mxu0
    %v286 = vadd.f32 %v50, %v284
    %287 = vst [vmem:[#allocation2] sm:$0x3] %v286
    // Predicated region
    $region26: #{tpu_custom_call.1} parent=1 // pred_check
      %p288 = pneg %p45
    $region27: #{tpu_custom_call.1} parent=1 // pred_check_branch
      %290 = sbr.rel (%p288) target = $region29
    $region28: #{tpu_custom_call.1} parent=1 // pred_region
      %v291 = vld [vmem:[#allocation2] sm:$0x3]
      %v292 = vld [vmem:[%s2] sm:$0x1]
      %v294 = vperm.slane %v292, 0
      %v296 = vadd.f32 %v291, %v294
      %297 = vst [vmem:[#allocation8] sm:$0x3] %v296
    $region29: #{tpu_custom_call.1} parent=1 // pred_fallthru
      _
    // Predicated region
    $region30: #{tpu_custom_call.1} parent=1 // pred_check
      _
    $region31: #{tpu_custom_call.1} parent=1 // pred_check_branch
      %299 = sbr.rel (0) target = $region33
    $region32: #{tpu_custom_call.1} parent=1 // pred_region
      %301 = vsyncadd [#allocation5], 0
      %s303 = sshll.u32 [#allocation8], 4
      %s304 = int_to_ptr.vmem [resolvable:$true] %s303
      %s305 = sshll.u32 %s3, 4
      %s306 = int_to_ptr.hbm [resolvable:$true] %s305
      %308 = dma.vmem_to_hbm [thread:$0]  %s304, 32, %s306, [#allocation5]
    $region33: #{tpu_custom_call.1} parent=1 // pred_fallthru
      _
    // Predicated region
    $region34: #{tpu_custom_call.1} parent=1 // pred_check
      _
    $region35: #{tpu_custom_call.1} parent=1 // pred_check_branch
      %310 = sbr.rel (0) target = $region37
    $region36: #{tpu_custom_call.1} parent=1 // pred_region
      %312 = dma.done [#allocation5], 32
    $region37: #{tpu_custom_call.1} parent=1 // pred_fallthru
      _
    %313 = vsyncpa [#allocation4], 1
    %314 = vsyncpa [#allocation7], 1
    %315 = vsyncpa [#allocation5], 1

</llo_original>
